<compile_context>
chip_gen: v7x
topology: tpu7x:2x2x1
jax: 0.10.0
libtpu: 0.0.40
codegen_flags: <defaults>
</compile_context>

<pallas_src>
import math
import functools

import jax
import jax.numpy as jnp
from jax import lax
from jax.experimental import pallas as pl
from jax.experimental.pallas import tpu as pltpu


# --------------------------------- kernel ------------------------------------

def adapter_kernel(x_ref, ln_w_ref, ln_b_ref, wd_ref, bd_ref, wu_ref, bu_ref,
                   out_ref, *, eps):
    x = x_ref[...].astype(jnp.float32)                        # (tr, D)

    # ---- LayerNorm (f32) ----
    mu = jnp.mean(x, axis=-1, keepdims=True)
    xc = x - mu
    var = jnp.mean(xc * xc, axis=-1, keepdims=True)
    xn = xc * lax.rsqrt(var + eps) * ln_w_ref[...] + ln_b_ref[...]

    # ---- down-proj -> ReLU -> up-proj (MXU in compute dtype, f32 accum) ----
    h = jnp.dot(xn.astype(wd_ref.dtype), wd_ref[...],
                preferred_element_type=jnp.float32) + bd_ref[...]
    h = jnp.maximum(h, 0.0)
    y = jnp.dot(h.astype(wu_ref.dtype), wu_ref[...],
                preferred_element_type=jnp.float32) + bu_ref[...]

    # ---- residual ----
    out_ref[...] = (x + y).astype(out_ref.dtype)


# --------------------------------- wrapper -----------------------------------

def _pick_row_tile(n_rows, D, P, x_itemsize, w_itemsize,
                   vmem_budget=24 * 1024 * 1024):
    """Largest row tile that divides n_rows, is a multiple of 8 (sublane rule),
    and keeps the per-step VMEM working set under `vmem_budget`."""
    # Fixed (grid-invariant) VMEM: both weight matrices + LN params + biases.
    fixed = 2 * D * P * w_itemsize + (3 * D + P) * 4
    # Per-row VMEM: input+output tiles (double-buffered by the pipeline)
    # + f32 intermediates (x, xn/y reuse, hidden h).
    per_row = 2 * 2 * D * x_itemsize + (3 * D + P) * 4
    max_rows = max(8, (vmem_budget - fixed) // max(per_row, 1))

    if n_rows <= max_rows:
        return n_rows                      # full extent is always legal
    start = int(max_rows) - (int(max_rows) % 8)
    for tr in range(start, 7, -8):         # multiples of 8 only
        if n_rows % tr == 0:
            return tr
    return n_rows                          # fallback: single block


def adapter_layer(x, params, *, compute_dtype=jnp.bfloat16, eps=1e-5):
    """x: (..., D).  params = (ln_w, ln_b, w_down, b_down, w_up, b_up) with
    PyTorch layouts: w_down (P, D), w_up (D, P)."""
    ln_w, ln_b, w_down, b_down, w_up, b_up = params
    *lead, D = x.shape
    P = w_down.shape[0]
    n_rows = math.prod(lead) if lead else 1
    x2 = x.reshape(n_rows, D)

    # Wrapper-side layout plumbing (done once, not per grid step):
    # (in, out) weight layout, 2-D bias / LN tiles, compute-dtype cast.
    ops = [
        jnp.asarray(ln_w, jnp.float32).reshape(1, D),
        jnp.asarray(ln_b, jnp.float32).reshape(1, D),
        jnp.asarray(w_down).T.astype(compute_dtype),     # (D, P)
        jnp.asarray(b_down, jnp.float32).reshape(1, P),
        jnp.asarray(w_up).T.astype(compute_dtype),       # (P, D)
        jnp.asarray(b_up, jnp.float32).reshape(1, D),
    ]

    tr = _pick_row_tile(n_rows, D, P, x.dtype.itemsize,
                        jnp.dtype(compute_dtype).itemsize)
    grid = (n_rows // tr,)

    row_spec = pl.BlockSpec((tr, D), lambda i: (i, 0))
    # Constant index_map -> parameter tiles stay resident in VMEM across steps.
    param_specs = [pl.BlockSpec(p.shape, lambda i: (0, 0)) for p in ops]

    flops = 4 * n_rows * D * P + 10 * n_rows * D
    bytes_accessed = (2 * n_rows * D * x.dtype.itemsize
                      + sum(int(p.size) * p.dtype.itemsize for p in ops))

    out2 = pl.pallas_call(
        functools.partial(adapter_kernel, eps=eps),
        out_shape=jax.ShapeDtypeStruct((n_rows, D), x.dtype),
        grid_spec=pltpu.PrefetchScalarGridSpec(
            num_scalar_prefetch=0,
            grid=grid,
            in_specs=[row_spec] + param_specs,
            out_specs=pl.BlockSpec((tr, D), lambda i: (i, 0)),
        ),
        compiler_params=pltpu.CompilerParams(
            dimension_semantics=("parallel",),
            vmem_limit_bytes=64 * 1024 * 1024),
        cost_estimate=pl.CostEstimate(
            flops=flops, transcendentals=n_rows, bytes_accessed=bytes_accessed),
    )(x2, *ops)

    return out2.reshape(x.shape)


# ------------------------- deterministic param init --------------------------

def init_params(key, D, P, *, weight_scale=0.1):
    # NOTE: the PyTorch module initializes down/up weights with
    # uniform(-1e-6, 1e-6) and zero biases (a near-identity adapter).  We use
    # larger deterministic magnitudes here so the numerical check actually
    # exercises the matmul path; the forward-pass semantics are identical.
    k1, k2, k3, k4, k5, k6 = jax.random.split(key, 6)
    ln_w = 1.0 + 0.05 * jax.random.normal(k1, (D,), jnp.float32)
    ln_b = 0.02 * jax.random.normal(k2, (D,), jnp.float32)
    w_down = jax.random.uniform(k3, (P, D), jnp.float32, -weight_scale, weight_scale)
    b_down = 0.02 * jax.random.normal(k4, (P,), jnp.float32)
    w_up = jax.random.uniform(k5, (D, P), jnp.float32, -weight_scale, weight_scale)
    b_up = 0.02 * jax.random.normal(k6, (D,), jnp.float32)
    return (ln_w, ln_b, w_down, b_down, w_up, b_up)


# ----------------------------- pure-JAX reference ----------------------------

def reference_forward(x, params, eps=1e-5):
    ln_w, ln_b, w_down, b_down, w_up, b_up = params
    mu = x.mean(-1, keepdims=True)
    var = ((x - mu) ** 2).mean(-1, keepdims=True)
    y = (x - mu) / jnp.sqrt(var + eps) * ln_w + ln_b
    y = y @ w_down.T + b_down
    y = jnp.maximum(y, 0.0)
    y = y @ w_up.T + b_up
    return x + y


# ----------------------------------- main -------------------------------------

if __name__ == "__main__":
    B, T, D, P = 2, 8, 32, 16          # batch, seq, input_dim, projection_dim

    key = jax.random.PRNGKey(0)
    kx, kp = jax.random.split(key)
    x = jax.random.normal(kx, (B, T, D), jnp.float32)
    params = init_params(kp, D, P)

    ref = reference_forward(x, params)

    # f32 compute path: tight check of the kernel math (structure bugs).
    out_f32 = jax.block_until_ready(
        adapter_layer(x, params, compute_dtype=jnp.float32))
    assert out_f32.shape == x.shape
    diff = jnp.max(jnp.abs(out_f32 - ref))
    assert jnp.allclose(out_f32, ref, atol=1e-5, rtol=1e-5), \
        f"f32 max abs diff {diff}"

    # Default bf16 MXU path: looser tolerance (LayerNorm / accumulation in f32).
    out_bf16 = jax.block_until_ready(adapter_layer(x, params))
    diff = jnp.max(jnp.abs(out_bf16 - ref))
    assert jnp.allclose(out_bf16, ref, atol=2e-2, rtol=2e-2), \
        f"bf16 max abs diff {diff}"

    print("KERNEL_OK")
</pallas_src>

<mosaic_0001>
module attributes {stable_mosaic.version = 11 : i64} {
  func.func @adapter_kernel(%arg0: i32, %arg1: memref<16x32xf32, #tpu.memory_space<vmem>>, %arg2: memref<1x32xf32, #tpu.memory_space<vmem>>, %arg3: memref<1x32xf32, #tpu.memory_space<vmem>>, %arg4: memref<32x16xf32, #tpu.memory_space<vmem>>, %arg5: memref<1x16xf32, #tpu.memory_space<vmem>>, %arg6: memref<16x32xf32, #tpu.memory_space<vmem>>, %arg7: memref<1x32xf32, #tpu.memory_space<vmem>>, %arg8: memref<16x32xf32, #tpu.memory_space<vmem>>) attributes {dimension_semantics = [#tpu.dimension_semantics<parallel>], iteration_bounds = array<i64: 1>, scalar_prefetch = 0 : i64, scratch_operands = 0 : i64, tpu.core_type = #tpu.core_type<tc>, window_params = [{transform_indices = @transform_0, window_bounds = array<i64: 16, 32>}, {pipeline_mode = #tpu.pipeline_mode<synchronous>, transform_indices = @transform_1, window_bounds = array<i64: 1, 32>}, {pipeline_mode = #tpu.pipeline_mode<synchronous>, transform_indices = @transform_2, window_bounds = array<i64: 1, 32>}, {pipeline_mode = #tpu.pipeline_mode<synchronous>, transform_indices = @transform_3, window_bounds = array<i64: 32, 16>}, {pipeline_mode = #tpu.pipeline_mode<synchronous>, transform_indices = @transform_4, window_bounds = array<i64: 1, 16>}, {pipeline_mode = #tpu.pipeline_mode<synchronous>, transform_indices = @transform_5, window_bounds = array<i64: 16, 32>}, {pipeline_mode = #tpu.pipeline_mode<synchronous>, transform_indices = @transform_6, window_bounds = array<i64: 1, 32>}, {transform_indices = @transform_7, window_bounds = array<i64: 16, 32>}]} {
    %c0 = arith.constant 0 : index
    %c0_0 = arith.constant 0 : index
    %0 = vector.load %arg1[%c0, %c0_0] : memref<16x32xf32, #tpu.memory_space<vmem>>, vector<16x32xf32>
    %cst = arith.constant dense<0.000000e+00> : vector<16xf32>
    %1 = vector.multi_reduction <add>, %0, %cst [1] : vector<16x32xf32> to vector<16xf32>
    %2 = vector.shape_cast %1 : vector<16xf32> to vector<16x1xf32>
    %cst_1 = arith.constant 3.200000e+01 : f32
    %3 = vector.broadcast %cst_1 : f32 to vector<16x1xf32>
    %4 = arith.divf %2, %3 : vector<16x1xf32>
    %5 = vector.broadcast %4 : vector<16x1xf32> to vector<16x32xf32>
    %6 = arith.subf %0, %5 : vector<16x32xf32>
    %7 = arith.mulf %6, %6 : vector<16x32xf32>
    %cst_2 = arith.constant dense<0.000000e+00> : vector<16xf32>
    %8 = vector.multi_reduction <add>, %7, %cst_2 [1] : vector<16x32xf32> to vector<16xf32>
    %9 = vector.shape_cast %8 : vector<16xf32> to vector<16x1xf32>
    %cst_3 = arith.constant 3.200000e+01 : f32
    %10 = vector.broadcast %cst_3 : f32 to vector<16x1xf32>
    %11 = arith.divf %9, %10 : vector<16x1xf32>
    %cst_4 = arith.constant 9.99999974E-6 : f32
    %12 = vector.broadcast %cst_4 : f32 to vector<16x1xf32>
    %13 = arith.addf %11, %12 : vector<16x1xf32>
    %14 = math.rsqrt %13 : vector<16x1xf32>
    %15 = vector.broadcast %14 : vector<16x1xf32> to vector<16x32xf32>
    %16 = arith.mulf %6, %15 : vector<16x32xf32>
    %c0_5 = arith.constant 0 : index
    %c0_6 = arith.constant 0 : index
    %17 = vector.load %arg2[%c0_5, %c0_6] : memref<1x32xf32, #tpu.memory_space<vmem>>, vector<1x32xf32>
    %18 = vector.broadcast %17 : vector<1x32xf32> to vector<16x32xf32>
    %19 = arith.mulf %16, %18 : vector<16x32xf32>
    %c0_7 = arith.constant 0 : index
    %c0_8 = arith.constant 0 : index
    %20 = vector.load %arg3[%c0_7, %c0_8] : memref<1x32xf32, #tpu.memory_space<vmem>>, vector<1x32xf32>
    %21 = vector.broadcast %20 : vector<1x32xf32> to vector<16x32xf32>
    %22 = arith.addf %19, %21 : vector<16x32xf32>
    %c0_9 = arith.constant 0 : index
    %c0_10 = arith.constant 0 : index
    %23 = vector.load %arg4[%c0_9, %c0_10] : memref<32x16xf32, #tpu.memory_space<vmem>>, vector<32x16xf32>
    %cst_11 = arith.constant dense<0.000000e+00> : vector<16x16xf32>
    %24 = tpu.matmul %22, %23, %cst_11 {dimension_numbers = #tpu.dot_dimension_numbers<[1], [0], [0], [1], [0, 0, 1, 1], [], []>} : vector<16x32xf32>, vector<32x16xf32>, vector<16x16xf32> -> vector<16x16xf32>
    %c0_12 = arith.constant 0 : index
    %c0_13 = arith.constant 0 : index
    %25 = vector.load %arg5[%c0_12, %c0_13] : memref<1x16xf32, #tpu.memory_space<vmem>>, vector<1x16xf32>
    %26 = vector.broadcast %25 : vector<1x16xf32> to vector<16x16xf32>
    %27 = arith.addf %24, %26 : vector<16x16xf32>
    %cst_14 = arith.constant 0.000000e+00 : f32
    %28 = vector.broadcast %cst_14 : f32 to vector<16x16xf32>
    %29 = arith.maximumf %27, %28 : vector<16x16xf32>
    %c0_15 = arith.constant 0 : index
    %c0_16 = arith.constant 0 : index
    %30 = vector.load %arg6[%c0_15, %c0_16] : memref<16x32xf32, #tpu.memory_space<vmem>>, vector<16x32xf32>
    %cst_17 = arith.constant dense<0.000000e+00> : vector<16x32xf32>
    %31 = tpu.matmul %29, %30, %cst_17 {dimension_numbers = #tpu.dot_dimension_numbers<[1], [0], [0], [1], [0, 0, 1, 1], [], []>} : vector<16x16xf32>, vector<16x32xf32>, vector<16x32xf32> -> vector<16x32xf32>
    %c0_18 = arith.constant 0 : index
    %c0_19 = arith.constant 0 : index
    %32 = vector.load %arg7[%c0_18, %c0_19] : memref<1x32xf32, #tpu.memory_space<vmem>>, vector<1x32xf32>
    %33 = vector.broadcast %32 : vector<1x32xf32> to vector<16x32xf32>
    %34 = arith.addf %31, %33 : vector<16x32xf32>
    %35 = arith.addf %0, %34 : vector<16x32xf32>
    %c0_20 = arith.constant 0 : index
    %c0_21 = arith.constant 0 : index
    %36 = vector.load %arg8[%c0_20, %c0_21] : memref<16x32xf32, #tpu.memory_space<vmem>>, vector<16x32xf32>
    tpu.vector_store %arg8[%c0_20, %c0_21], %35 {strides = array<i32>} : memref<16x32xf32, #tpu.memory_space<vmem>>, vector<16x32xf32>,
    return
  }
  func.func @transform_0(%arg0: i32) -> (i32, i32) {
    %c0_i32 = arith.constant 0 : i32
    %c0_i32_0 = arith.constant 0 : i32
    return %arg0, %c0_i32 : i32, i32
  }
  func.func @transform_1(%arg0: i32) -> (i32, i32) {
    %c0_i32 = arith.constant 0 : i32
    %c0_i32_0 = arith.constant 0 : i32
    %c0_i32_1 = arith.constant 0 : i32
    return %c0_i32, %c0_i32_0 : i32, i32
  }
  func.func @transform_2(%arg0: i32) -> (i32, i32) {
    %c0_i32 = arith.constant 0 : i32
    %c0_i32_0 = arith.constant 0 : i32
    %c0_i32_1 = arith.constant 0 : i32
    return %c0_i32, %c0_i32_0 : i32, i32
  }
  func.func @transform_3(%arg0: i32) -> (i32, i32) {
    %c0_i32 = arith.constant 0 : i32
    %c0_i32_0 = arith.constant 0 : i32
    %c0_i32_1 = arith.constant 0 : i32
    return %c0_i32, %c0_i32_0 : i32, i32
  }
  func.func @transform_4(%arg0: i32) -> (i32, i32) {
    %c0_i32 = arith.constant 0 : i32
    %c0_i32_0 = arith.constant 0 : i32
    %c0_i32_1 = arith.constant 0 : i32
    return %c0_i32, %c0_i32_0 : i32, i32
  }
  func.func @transform_5(%arg0: i32) -> (i32, i32) {
    %c0_i32 = arith.constant 0 : i32
    %c0_i32_0 = arith.constant 0 : i32
    %c0_i32_1 = arith.constant 0 : i32
    return %c0_i32, %c0_i32_0 : i32, i32
  }
  func.func @transform_6(%arg0: i32) -> (i32, i32) {
    %c0_i32 = arith.constant 0 : i32
    %c0_i32_0 = arith.constant 0 : i32
    %c0_i32_1 = arith.constant 0 : i32
    return %c0_i32, %c0_i32_0 : i32, i32
  }
  func.func @transform_7(%arg0: i32) -> (i32, i32) {
    %c0_i32 = arith.constant 0 : i32
    %c0_i32_0 = arith.constant 0 : i32
    return %arg0, %c0_i32 : i32, i32
  }
}

</mosaic_0001>

<llo_original>
// kernel: tpu_custom_call.1
$region0: #{tpu_custom_call.1}
  #allocation0 [shape = 'u32[]', space=smem, size = 0x4, offset = 0x4, fixed_abs, tag = 'smem constant byte address 0x4 - core index']
  #allocation1 [shape = 'u32[144,128]{1,0:T(1,128)}', space=vmem, size = 0x12000, scoped, tag = 'internal scratch']
  %s0 = inlined_call_operand.hbm [shape: f32[16,32], index: 0, kind: input, shape index: {}]
  %s1 = inlined_call_operand.hbm [shape: f32[1,32], index: 1, kind: input, shape index: {}]
  %s2 = inlined_call_operand.hbm [shape: f32[1,32], index: 2, kind: input, shape index: {}]
  %s3 = inlined_call_operand.hbm [shape: f32[32,16], index: 3, kind: input, shape index: {}]
  %s4 = inlined_call_operand.hbm [shape: f32[1,16], index: 4, kind: input, shape index: {}]
  %s5 = inlined_call_operand.hbm [shape: f32[16,32], index: 5, kind: input, shape index: {}]
  %s6 = inlined_call_operand.hbm [shape: f32[1,32], index: 6, kind: input, shape index: {}]
  %s7 = inlined_call_operand.hbm [shape: f32[16,32], index: 7, kind: output, shape index: {}]
  %s8 = sld [smem:[#allocation0]]
  $region66: #{tpu_custom_call.1} parent=0
    _
  %s10 = ssub.s32 1, %s8
  %s11 = scalar_select 0, %s10, %s8
  $region1: #{tpu_custom_call.1} parent=0
    #allocation2 [shape = 'u8[8192]{0}', space=vmem, size = 0x2000, scoped, tag = 'input window, operand 0, single buffered']
    #allocation3 [shape = 's32[1]{0}', space=sflag, size = 0x4, scoped, tag = 'scoped memory for tpu_custom_call.1']
    #allocation4 [shape = 's32[1]{0}', space=sflag, size = 0x4, scoped, tag = 'scoped memory for tpu_custom_call.1']
    #allocation5 [shape = 'u8[512]{0}', space=vmem, size = 0x400, scoped, tag = 'input window, operand 1, single buffered']
    #allocation6 [shape = 's32[1]{0}', space=sflag, size = 0x4, scoped, tag = 'scoped memory for tpu_custom_call.1']
    #allocation7 [shape = 'u8[512]{0}', space=vmem, size = 0x400, scoped, tag = 'input window, operand 2, single buffered']
    #allocation8 [shape = 'u8[16384]{0}', space=vmem, size = 0x4000, scoped, tag = 'input window, operand 3, single buffered']
    #allocation9 [shape = 's32[1]{0}', space=sflag, size = 0x4, scoped, tag = 'scoped memory for tpu_custom_call.1']
    #allocation10 [shape = 'u8[512]{0}', space=vmem, size = 0x400, scoped, tag = 'input window, operand 4, single buffered']
    #allocation11 [shape = 'u8[8192]{0}', space=vmem, size = 0x2000, scoped, tag = 'input window, operand 5, single buffered']
    #allocation12 [shape = 's32[1]{0}', space=sflag, size = 0x4, scoped, tag = 'scoped memory for tpu_custom_call.1']
    #allocation13 [shape = 'u8[512]{0}', space=vmem, size = 0x400, scoped, tag = 'input window, operand 6, single buffered']
    #allocation14 [shape = 'u8[8192]{0}', space=vmem, size = 0x2000, scoped, tag = 'output window, operand 0, single buffered']
    %12 = vsyncpa [#allocation3], 0
    %13 = vsyncpa [#allocation6], 0
    %14 = vsyncpa [#allocation9], 0
    %15 = vsyncpa [#allocation12], 0
    %16 = vsyncpa [#allocation4], 0
    // Predicated region
    $region2: #{tpu_custom_call.1} parent=1 // pred_check
      _
    $region3: #{tpu_custom_call.1} parent=1 // pred_check_branch
      %18 = sbr.rel (0) target = $region5
    $region4: #{tpu_custom_call.1} parent=1 // pred_region
      %s20 = ssub.s32 256, 256
      %21 = vsyncadd [#allocation3], %s20
      %s22 = sshll.u32 [#allocation2], 4
      %s23 = int_to_ptr.vmem [resolvable:$true] %s22
      %28 = dma.hbm_to_vmem [thread:$0]  %s0, 256, %s23, [#allocation3], 128, 128, 8
    $region5: #{tpu_custom_call.1} parent=1 // pred_fallthru
      _
    // Predicated region
    $region6: #{tpu_custom_call.1} parent=1 // pred_check
      _
    $region7: #{tpu_custom_call.1} parent=1 // pred_check_branch
      %30 = sbr.rel (0) target = $region9
    $region8: #{tpu_custom_call.1} parent=1 // pred_region
      %s32 = ssub.s32 16, 16
      %33 = vsyncadd [#allocation6], %s32
      %s35 = sshll.u32 [#allocation5], 4
      %s36 = int_to_ptr.vmem [resolvable:$true] %s35
      %38 = dma.hbm_to_vmem [thread:$0]  %s1, 16, %s36, [#allocation6]
    $region9: #{tpu_custom_call.1} parent=1 // pred_fallthru
      _
    // Predicated region
    $region10: #{tpu_custom_call.1} parent=1 // pred_check
      _
    $region11: #{tpu_custom_call.1} parent=1 // pred_check_branch
      %40 = sbr.rel (0) target = $region13
    $region12: #{tpu_custom_call.1} parent=1 // pred_region
      %s42 = ssub.s32 16, 16
      %43 = vsyncadd [#allocation6], %s42
      %s45 = sshll.u32 [#allocation7], 4
      %s46 = int_to_ptr.vmem [resolvable:$true] %s45
      %48 = dma.hbm_to_vmem [thread:$0]  %s2, 16, %s46, [#allocation6]
    $region13: #{tpu_custom_call.1} parent=1 // pred_fallthru
      _
    // Predicated region
    $region14: #{tpu_custom_call.1} parent=1 // pred_check
      _
    $region15: #{tpu_custom_call.1} parent=1 // pred_check_branch
      %50 = sbr.rel (0) target = $region17
    $region16: #{tpu_custom_call.1} parent=1 // pred_region
      %s52 = ssub.s32 512, 512
      %53 = vsyncadd [#allocation9], %s52
      %s54 = sshll.u32 [#allocation8], 4
      %s55 = int_to_ptr.vmem [resolvable:$true] %s54
      %60 = dma.hbm_to_vmem [thread:$0]  %s3, 512, %s55, [#allocation9], 128, 128, 8
    $region17: #{tpu_custom_call.1} parent=1 // pred_fallthru
      _
    // Predicated region
    $region18: #{tpu_custom_call.1} parent=1 // pred_check
      _
    $region19: #{tpu_custom_call.1} parent=1 // pred_check_branch
      %62 = sbr.rel (0) target = $region21
    $region20: #{tpu_custom_call.1} parent=1 // pred_region
      %s64 = ssub.s32 16, 16
      %65 = vsyncadd [#allocation9], %s64
      %s67 = sshll.u32 [#allocation10], 4
      %s68 = int_to_ptr.vmem [resolvable:$true] %s67
      %70 = dma.hbm_to_vmem [thread:$0]  %s4, 16, %s68, [#allocation9]
    $region21: #{tpu_custom_call.1} parent=1 // pred_fallthru
      _
    // Predicated region
    $region22: #{tpu_custom_call.1} parent=1 // pred_check
      _
    $region23: #{tpu_custom_call.1} parent=1 // pred_check_branch
      %72 = sbr.rel (0) target = $region25
    $region24: #{tpu_custom_call.1} parent=1 // pred_region
      %s74 = ssub.s32 256, 256
      %75 = vsyncadd [#allocation12], %s74
      %s76 = sshll.u32 [#allocation11], 4
      %s77 = int_to_ptr.vmem [resolvable:$true] %s76
      %82 = dma.hbm_to_vmem [thread:$0]  %s5, 256, %s77, [#allocation12], 128, 128, 8
    $region25: #{tpu_custom_call.1} parent=1 // pred_fallthru
      _
    // Predicated region
    $region26: #{tpu_custom_call.1} parent=1 // pred_check
      _
    $region27: #{tpu_custom_call.1} parent=1 // pred_check_branch
      %84 = sbr.rel (0) target = $region29
    $region28: #{tpu_custom_call.1} parent=1 // pred_region
      %s86 = ssub.s32 16, 16
      %87 = vsyncadd [#allocation12], %s86
      %s89 = sshll.u32 [#allocation13], 4
      %s90 = int_to_ptr.vmem [resolvable:$true] %s89
      %92 = dma.hbm_to_vmem [thread:$0]  %s6, 16, %s90, [#allocation12]
    $region29: #{tpu_custom_call.1} parent=1 // pred_fallthru
      _
    // Predicated region
    $region30: #{tpu_custom_call.1} parent=1 // pred_check
      _
    $region31: #{tpu_custom_call.1} parent=1 // pred_check_branch
      %94 = sbr.rel (0) target = $region33
    $region32: #{tpu_custom_call.1} parent=1 // pred_region
      %95 = dma.done [#allocation3], 256
    $region33: #{tpu_custom_call.1} parent=1 // pred_fallthru
      _
    // Predicated region
    $region34: #{tpu_custom_call.1} parent=1 // pred_check
      _
    $region35: #{tpu_custom_call.1} parent=1 // pred_check_branch
      %97 = sbr.rel (0) target = $region37
    $region36: #{tpu_custom_call.1} parent=1 // pred_region
      %98 = dma.done [#allocation6], 16
    $region37: #{tpu_custom_call.1} parent=1 // pred_fallthru
      _
    // Predicated region
    $region38: #{tpu_custom_call.1} parent=1 // pred_check
      _
    $region39: #{tpu_custom_call.1} parent=1 // pred_check_branch
      %100 = sbr.rel (0) target = $region41
    $region40: #{tpu_custom_call.1} parent=1 // pred_region
      %101 = dma.done [#allocation6], 16
    $region41: #{tpu_custom_call.1} parent=1 // pred_fallthru
      _
    // Predicated region
    $region42: #{tpu_custom_call.1} parent=1 // pred_check
      _
    $region43: #{tpu_custom_call.1} parent=1 // pred_check_branch
      %103 = sbr.rel (0) target = $region45
    $region44: #{tpu_custom_call.1} parent=1 // pred_region
      %104 = dma.done [#allocation9], 512
    $region45: #{tpu_custom_call.1} parent=1 // pred_fallthru
      _
    // Predicated region
    $region46: #{tpu_custom_call.1} parent=1 // pred_check
      _
    $region47: #{tpu_custom_call.1} parent=1 // pred_check_branch
      %106 = sbr.rel (0) target = $region49
    $region48: #{tpu_custom_call.1} parent=1 // pred_region
      %107 = dma.done [#allocation9], 16
    $region49: #{tpu_custom_call.1} parent=1 // pred_fallthru
      _
    // Predicated region
    $region50: #{tpu_custom_call.1} parent=1 // pred_check
      _
    $region51: #{tpu_custom_call.1} parent=1 // pred_check_branch
      %109 = sbr.rel (0) target = $region53
    $region52: #{tpu_custom_call.1} parent=1 // pred_region
      %110 = dma.done [#allocation12], 256
    $region53: #{tpu_custom_call.1} parent=1 // pred_fallthru
      _
    // Predicated region
    $region54: #{tpu_custom_call.1} parent=1 // pred_check
      _
    $region55: #{tpu_custom_call.1} parent=1 // pred_check_branch
      %112 = sbr.rel (0) target = $region57
    $region56: #{tpu_custom_call.1} parent=1 // pred_region
      %113 = dma.done [#allocation12], 16
    $region57: #{tpu_custom_call.1} parent=1 // pred_fallthru
      _
    %v114 = vld [vmem:[#allocation2] sm:$0xff]
    %v115 = vld [vmem:[#allocation2 + $0x8] sm:$0xff]
    %vm116 = vcmask 261120
    %v117 = vsel %vm116, %v114, 0.0
    %118 = vadd.xlane.f32.xlu0 %v117
    %v119 = vpop.xlane.xlu0 %118
    %v120 = vsel %vm116, %v115, 0.0
    %121 = vadd.xlane.f32.xlu0 %v120
    %v122 = vpop.xlane.xlu0 %121
    %v123 = vrcp.pop 32.0
    %v124 = vmul.f32 %v119, %v123
    %v125 = vmul.f32 %v122, %v123
    %v126 = vsub.f32 %v114, %v124
    %v127 = vsub.f32 %v115, %v125
    %v128 = vmul.f32 %v126, %v126
    %v129 = vmul.f32 %v127, %v127
    %v130 = vsel %vm116, %v128, 0.0
    %131 = vadd.xlane.f32.xlu0 %v130
    %v132 = vpop.xlane.xlu0 %131
    %v133 = vsel %vm116, %v129, 0.0
    %134 = vadd.xlane.f32.xlu0 %v133
    %v135 = vpop.xlane.xlu0 %134
    %v136 = vmul.f32 %v132, %v123
    %v137 = vmul.f32 %v135, %v123
    %v138 = vadd.f32 %v136, 1e-05
    %v139 = vadd.f32 %v137, 1e-05
    %v140 = vrsqrt.pop %v138
    %v141 = vrsqrt.pop %v139
    %v142 = vmul.f32 %v126, %v140
    %v143 = vmul.f32 %v127, %v141
    %v144 = vld [vmem:[#allocation5] sm:$0x1]
    %v146 = vlaneseq
    %v147 = vshrl.u32 %v146, 7
    %v148 = vsub.s32 0, %v147
    %v149 = vrot.slane %v144, %v148
    %v151 = vmul.f32 %v142, %v149
    %v152 = vmul.f32 %v143, %v149
    %v153 = vld [vmem:[#allocation7] sm:$0x1]
    %v155 = vlaneseq
    %v156 = vshrl.u32 %v155, 7
    %v157 = vsub.s32 0, %v156
    %v158 = vrot.slane %v153, %v157
    %v160 = vadd.f32 %v151, %v158
    %v161 = vadd.f32 %v152, %v158
    %v162 = vld [vmem:[#allocation8] sm:$0xff]
    %v163 = vld [vmem:[#allocation8 + $0x8] sm:$0xff]
    %v164 = vld [vmem:[#allocation8 + $0x10] sm:$0xff]
    %v165 = vld [vmem:[#allocation8 + $0x18] sm:$0xff]
    %v166 = vld [vmem:[#allocation10] sm:$0x1]
    %v168 = vlaneseq
    %v169 = vshrl.u32 %v168, 7
    %v170 = vsub.s32 0, %v169
    %v171 = vrot.slane %v166, %v170
    %v174 = vsel %vm116, %v160, 0
    %v177 = vsel %vm116, %v161, 0
    %179 = vmatprep.subr.mxu0 0.0
    %180 = vmatpush1.msra.mxu0 %v162
    %181 = vmatprep.subr.mxu0 0.0
    %182 = vmatpush1.msra.mxu0 %v163
    %183 = vmatprep.subr.mxu0 0.0
    %184 = vmatpush1.msra.mxu0 %v164
    %185 = vmatprep.subr.mxu0 0.0
    %186 = vmatpush1.msra.mxu0 %v165
    %187 = vmatprep.subr.mxu0 0.0
    %188 = vmatpush1.msra.mxu0 0.0
    %189 = vmatprep.subr.mxu0 0.0
    %190 = vmatpush1.msra.mxu0 0.0
    %191 = vmatprep.subr.mxu0 0.0
    %192 = vmatpush1.msra.mxu0 0.0
    %193 = vmatprep.subr.mxu0 0.0
    %194 = vmatpush1.msra.mxu0 0.0
    %195 = vmatprep.subr.mxu0 0.0
    %196 = vmatpush1.msra.mxu0 0.0
    %197 = vmatprep.subr.mxu0 0.0
    %198 = vmatpush1.msra.mxu0 0.0
    %199 = vmatprep.subr.mxu0 0.0
    %200 = vmatpush1.msra.mxu0 0.0
    %201 = vmatprep.subr.mxu0 0.0
    %202 = vmatpush1.msra.mxu0 0.0
    %203 = vmatprep.subr.mxu0 0.0
    %204 = vmatpush1.msra.mxu0 0.0
    %205 = vmatprep.subr.mxu0 0.0
    %206 = vmatpush1.msra.mxu0 0.0
    %207 = vmatprep.subr.mxu0 0.0
    %208 = vmatpush1.msra.mxu0 0.0
    %209 = vmatprep.subr.mxu0 0.0
    %210 = vmatpush1.msra.mxu0 0.0
    %211 = vmatprep.subr.mxu0 0.0
    %212 = vmatpush1.msra.mxu0 0.0
    %213 = vmatprep.subr.mxu0 0.0
    %214 = vmatpush1.msra.mxu0 0.0
    %215 = vmatprep.subr.mxu0 0.0
    %216 = vmatpush1.msra.mxu0 0.0
    %217 = vmatprep.subr.mxu0 0.0
    %218 = vmatpush1.msra.mxu0 0.0
    %219 = vmatprep.subr.mxu0 0.0
    %220 = vmatpush1.msra.mxu0 0.0
    %221 = vmatprep.subr.mxu0 0.0
    %222 = vmatpush1.msra.mxu0 0.0
    %223 = vmatprep.subr.mxu0 0.0
    %224 = vmatpush1.msra.mxu0 0.0
    %225 = vmatprep.subr.mxu0 0.0
    %226 = vmatpush1.msra.mxu0 0.0
    %227 = vmatprep.subr.mxu0 0.0
    %228 = vmatpush1.msra.mxu0 0.0
    %229 = vmatprep.subr.mxu0 0.0
    %230 = vmatpush1.msra.mxu0 0.0
    %231 = vmatprep.subr.mxu0 0.0
    %232 = vmatpush1.msra.mxu0 0.0
    %233 = vmatprep.subr.mxu0 0.0
    %234 = vmatpush1.msra.mxu0 0.0
    %235 = vmatprep.subr.mxu0 0.0
    %236 = vmatpush1.msra.mxu0 0.0
    %237 = vmatprep.subr.mxu0 0.0
    %238 = vmatpush1.msra.mxu0 0.0
    %239 = vmatprep.subr.mxu0 0.0
    %240 = vmatpush1.msra.mxu0 0.0
    %241 = vmatprep.subr.mxu0 0.0
    %242 = vmatpush1.msra.mxu0 0.0
    %243 = vmatprep.mubr.f32.mxu0 0.0
    %244 = vmatmul.mubr.f32.gmra.mrb[0].mxu0 %v174
    %v245 = vpop.f32.mrb[0].mxu0
    %v246 = vadd.f32 %v171, %v245
    %v247 = vpop.f32.mrb[0].mxu0
    %248 = vmatprep.mubr.f32.mxu0 0.0
    %249 = vmatmul.mubr.f32.gmra.mrb[0].mxu0 %v177
    %v250 = vpop.f32.mrb[0].mxu0
    %v251 = vadd.f32 %v171, %v250
    %v252 = vpop.f32.mrb[0].mxu0
    %253 = vdwg.mxu0
    %v254 = vmax.f32 %v246, 0.0
    %v255 = vmax.f32 %v251, 0.0
    %v256 = vld [vmem:[#allocation11] sm:$0xff]
    %v257 = vld [vmem:[#allocation11 + $0x8] sm:$0xff]
    %v258 = vld [vmem:[#allocation13] sm:$0x1]
    %v260 = vlaneseq
    %v261 = vshrl.u32 %v260, 7
    %v262 = vsub.s32 0, %v261
    %v263 = vrot.slane %v258, %v262
    %vm265 = vcmask 130048
    %v267 = vsel %vm265, %v254, 0
    %v270 = vsel %vm265, %v255, 0
    %272 = vmatprep.subr.mxu0 0.0
    %273 = vmatpush1.msra.mxu0 %v256
    %274 = vmatprep.subr.mxu0 0.0
    %275 = vmatpush1.msra.mxu0 %v257
    %276 = vmatprep.subr.mxu0 0.0
    %277 = vmatpush1.msra.mxu0 0.0
    %278 = vmatprep.subr.mxu0 0.0
    %279 = vmatpush1.msra.mxu0 0.0
    %280 = vmatprep.subr.mxu0 0.0
    %281 = vmatpush1.msra.mxu0 0.0
    %282 = vmatprep.subr.mxu0 0.0
    %283 = vmatpush1.msra.mxu0 0.0
    %284 = vmatprep.subr.mxu0 0.0
    %285 = vmatpush1.msra.mxu0 0.0
    %286 = vmatprep.subr.mxu0 0.0
    %287 = vmatpush1.msra.mxu0 0.0
    %288 = vmatprep.subr.mxu0 0.0
    %289 = vmatpush1.msra.mxu0 0.0
    %290 = vmatprep.subr.mxu0 0.0
    %291 = vmatpush1.msra.mxu0 0.0
    %292 = vmatprep.subr.mxu0 0.0
    %293 = vmatpush1.msra.mxu0 0.0
    %294 = vmatprep.subr.mxu0 0.0
    %295 = vmatpush1.msra.mxu0 0.0
    %296 = vmatprep.subr.mxu0 0.0
    %297 = vmatpush1.msra.mxu0 0.0
    %298 = vmatprep.subr.mxu0 0.0
    %299 = vmatpush1.msra.mxu0 0.0
    %300 = vmatprep.subr.mxu0 0.0
    %301 = vmatpush1.msra.mxu0 0.0
    %302 = vmatprep.subr.mxu0 0.0
    %303 = vmatpush1.msra.mxu0 0.0
    %304 = vmatprep.subr.mxu0 0.0
    %305 = vmatpush1.msra.mxu0 0.0
    %306 = vmatprep.subr.mxu0 0.0
    %307 = vmatpush1.msra.mxu0 0.0
    %308 = vmatprep.subr.mxu0 0.0
    %309 = vmatpush1.msra.mxu0 0.0
    %310 = vmatprep.subr.mxu0 0.0
    %311 = vmatpush1.msra.mxu0 0.0
    %312 = vmatprep.subr.mxu0 0.0
    %313 = vmatpush1.msra.mxu0 0.0
    %314 = vmatprep.subr.mxu0 0.0
    %315 = vmatpush1.msra.mxu0 0.0
    %316 = vmatprep.subr.mxu0 0.0
    %317 = vmatpush1.msra.mxu0 0.0
    %318 = vmatprep.subr.mxu0 0.0
    %319 = vmatpush1.msra.mxu0 0.0
    %320 = vmatprep.subr.mxu0 0.0
    %321 = vmatpush1.msra.mxu0 0.0
    %322 = vmatprep.subr.mxu0 0.0
    %323 = vmatpush1.msra.mxu0 0.0
    %324 = vmatprep.subr.mxu0 0.0
    %325 = vmatpush1.msra.mxu0 0.0
    %326 = vmatprep.subr.mxu0 0.0
    %327 = vmatpush1.msra.mxu0 0.0
    %328 = vmatprep.subr.mxu0 0.0
    %329 = vmatpush1.msra.mxu0 0.0
    %330 = vmatprep.subr.mxu0 0.0
    %331 = vmatpush1.msra.mxu0 0.0
    %332 = vmatprep.subr.mxu0 0.0
    %333 = vmatpush1.msra.mxu0 0.0
    %334 = vmatprep.subr.mxu0 0.0
    %335 = vmatpush1.msra.mxu0 0.0
    %336 = vmatprep.mubr.f32.mxu0 0.0
    %337 = vmatmul.mubr.f32.gmra.mrb[0].mxu0 %v267
    %v338 = vpop.f32.mrb[0].mxu0
    %v339 = vadd.f32 %v263, %v338
    %v340 = vpop.f32.mrb[0].mxu0
    %341 = vmatprep.mubr.f32.mxu0 0.0
    %342 = vmatmul.mubr.f32.gmra.mrb[0].mxu0 %v270
    %v343 = vpop.f32.mrb[0].mxu0
    %v344 = vadd.f32 %v263, %v343
    %v345 = vpop.f32.mrb[0].mxu0
    %346 = vdwg.mxu0
    %v347 = vadd.f32 %v114, %v339
    %v348 = vadd.f32 %v115, %v344
    %349 = vst.msk [vmem:[#allocation14] sm:$0xff] %vm116, %v347
    %350 = vst.msk [vmem:[#allocation14 + $0x8] sm:$0xff] %vm116, %v348
    // Predicated region
    $region58: #{tpu_custom_call.1} parent=1 // pred_check
      _
    $region59: #{tpu_custom_call.1} parent=1 // pred_check_branch
      %352 = sbr.rel (0) target = $region61
    $region60: #{tpu_custom_call.1} parent=1 // pred_region
      %s354 = ssub.s32 256, 256
      %355 = vsyncadd [#allocation4], %s354
      %s356 = sshll.u32 [#allocation14], 4
      %s357 = int_to_ptr.vmem [resolvable:$true] %s356
      %362 = dma.vmem_to_hbm [thread:$0]  %s357, 256, %s7, [#allocation4], 128, 128, 8
    $region61: #{tpu_custom_call.1} parent=1 // pred_fallthru
      _
    // Predicated region
    $region62: #{tpu_custom_call.1} parent=1 // pred_check
      _
    $region63: #{tpu_custom_call.1} parent=1 // pred_check_branch
      %364 = sbr.rel (0) target = $region65
    $region64: #{tpu_custom_call.1} parent=1 // pred_region
      %365 = dma.done [#allocation4], 256
    $region65: #{tpu_custom_call.1} parent=1 // pred_fallthru
      _
    %366 = vsyncpa [#allocation3], 1
    %367 = vsyncpa [#allocation6], 1
    %368 = vsyncpa [#allocation9], 1
    %369 = vsyncpa [#allocation12], 1
    %370 = vsyncpa [#allocation4], 1

</llo_original>
